<compile_context>
chip_gen: v7x
topology: tpu7x:2x2x1
jax: 0.10.0
libtpu: 0.0.40
codegen_flags: <defaults>
</compile_context>

<pallas_src>
import jax
import jax.numpy as jnp
import numpy as np
from jax import lax
from jax.experimental import pallas as pl
from jax.experimental.pallas import tpu as pltpu  # noqa: F401  (TPU backend)

ALPHA = -1.5
BETA = -0.5
ONE_HOT_0_ENCODING_SIZE = 8   # ONE_HOT_0_ENCODING_SIZE in the original script
HIDDEN = 32
N_LAYERS = 2


def _full_spec(shape):
    """BlockSpec covering the whole (small) array resident in VMEM."""
    nd = len(shape)
    return pl.BlockSpec(shape, lambda *_: (0,) * nd)


# ----------------------------------------------------------------------------
# Fused kernel: incidence normalization + N_LAYERS HNHN layers + readout head.
#
#   Bn     = HNHN-normalized incidence        (computed once; the torch model
#                                              recomputes the identical matrix
#                                              every layer)
#   per layer:
#     x_1 = Bn^T @ (x_0 @ W_{0->1}) + bias_{0->1}
#     x_0 = relu(Bn @ (x_1 @ W_{1->0}) + bias_{1->0})    (relu(x_1) is unused)
#   head:
#     out = max_over_nodes(x_0) @ lin_w + lin_b
# ----------------------------------------------------------------------------
def _make_fused_kernel(n_layers):
    def kernel(x0_ref, b_ref, *rest):
        # rest = [w01, b01, w10, b10] * n_layers, lin_w, lin_b, out_ref
        layer_refs = rest[: 4 * n_layers]
        lin_w_ref = rest[4 * n_layers]
        lin_b_ref = rest[4 * n_layers + 1]
        out_ref = rest[4 * n_layers + 2]

        # ---- incidence normalization (once) --------------------------------
        B = b_ref[...]                                           # [N, E]
        edge_sum = jnp.sum(B, axis=0, keepdims=True)             # [1, E]
        node_sum = jnp.sum(B, axis=1, keepdims=True)             # [N, 1]
        er = lax.rsqrt(edge_sum)
        # edge_sum ** -1.5 == rsqrt(x)^3 ; node_sum ** -0.5 == rsqrt(x)
        edge_norm = jnp.where(edge_sum > 0, er * er * er, 0.0)   # [1, E]
        node_norm = jnp.where(node_sum > 0, lax.rsqrt(node_sum), 0.0)  # [N, 1]
        nz = (B != 0).astype(B.dtype)
        # edge_factor[i] = 1 / sum_{k: B[i,k]!=0} edge_norm[k]
        edge_factor = pl.reciprocal(
            jnp.sum(nz * edge_norm, axis=1, keepdims=True), approx=False)  # [N, 1]
        # node_factor[j] = 1 / sum_{k: B[k,j]!=0} node_norm[k]
        node_factor = pl.reciprocal(
            jnp.sum(nz * node_norm, axis=0, keepdims=True), approx=False)  # [1, E]
        prod = B * edge_factor * edge_norm * node_factor * node_norm
        Bn = jnp.where(B != 0, prod, jnp.zeros_like(prod))       # [N, E]
        BnT = Bn.T                                               # [E, N] one XLU transpose,
                                                                 # hoisted out of the layer loop

        # ---- layers (static python loop; pure MXU/VPU work) ----------------
        x = x0_ref[...]                                          # [N, Cin]
        for l in range(n_layers):
            w01 = layer_refs[4 * l][...]
            b01 = layer_refs[4 * l + 1][...]
            w10 = layer_refs[4 * l + 2][...]
            b10 = layer_refs[4 * l + 3][...]
            t = jnp.dot(x, w01, preferred_element_type=jnp.float32)        # [N, H]
            x1 = jnp.dot(BnT, t, preferred_element_type=jnp.float32) + b01  # [E, H]
            u = jnp.dot(x1, w10, preferred_element_type=jnp.float32)       # [E, H]
            x0 = jnp.dot(Bn, u, preferred_element_type=jnp.float32) + b10  # [N, H]
            x = jnp.maximum(x0, 0.0)

        # ---- readout head (max over nodes + Linear(H -> 1)) ----------------
        pooled = jnp.max(x, axis=0, keepdims=True)               # [1, H]
        out_ref[...] = (
            jnp.dot(pooled, lin_w_ref[...], preferred_element_type=jnp.float32)
            + lin_b_ref[...]
        )                                                        # [1, 1]

    return kernel


def hnhn_forward(x0, incidence, params):
    """Full HNHNModel forward as a single fused pallas_call."""
    n_layers = len(params["layers"])
    flat_layer_args = []
    for (w01, b01, w10, b10) in params["layers"]:
        flat_layer_args += [w01, b01, w10, b10]
    args = [x0, incidence] + flat_layer_args + [params["lin_w"], params["lin_b"]]

    out = pl.pallas_call(
        _make_fused_kernel(n_layers),
        out_shape=jax.ShapeDtypeStruct((1, 1), jnp.float32),
        in_specs=[_full_spec(a.shape) for a in args],
        out_specs=_full_spec((1, 1)),
    )(*args)
    # matches torch: Linear applied to the max-pooled [H] vector -> [1]
    return out.reshape((1,))


# ----------------------------------------------------------------------------
# Pure-JAX reference (for correctness check only)
# ----------------------------------------------------------------------------
def hnhn_reference(x0, B, params):
    edge_norm = jnp.sum(B, axis=0) ** ALPHA                      # [E]
    node_norm = jnp.sum(B, axis=1) ** BETA                       # [N]
    nz = (B != 0).astype(B.dtype)
    edge_factor = 1.0 / (nz @ edge_norm)                         # [N]
    node_factor = 1.0 / (nz.T @ node_norm)                       # [E]
    Bn = jnp.where(
        B != 0,
        B * edge_factor[:, None] * edge_norm[None, :]
        * node_factor[None, :] * node_norm[:, None],
        0.0,
    )
    x = x0
    for (w01, b01, w10, b10) in params["layers"]:
        x1 = Bn.T @ (x @ w01) + b01
        x = jnp.maximum(Bn @ (x1 @ w10) + b10, 0.0)
    pooled = jnp.max(x, axis=0)
    return (pooled @ params["lin_w"][:, 0] + params["lin_b"][0, 0]).reshape((1,))


# ----------------------------------------------------------------------------
# Deterministic parameter init (shapes from ModifiedHNHNLayer / HNHNModel.__init__)
# ----------------------------------------------------------------------------
def init_params(key, in_channels, hidden, n_layers):
    layers = []
    gain = 1.414
    for i in range(n_layers):
        cin = in_channels if i == 0 else hidden
        key, k1, k2 = jax.random.split(key, 3)
        bound01 = gain * np.sqrt(6.0 / (cin + hidden))
        bound10 = gain * np.sqrt(6.0 / (hidden + hidden))
        w01 = jax.random.uniform(k1, (cin, hidden), jnp.float32, -bound01, bound01)
        w10 = jax.random.uniform(k2, (hidden, hidden), jnp.float32, -bound10, bound10)
        b01 = jnp.zeros((1, hidden), jnp.float32)   # torch.zeros(1, hidden)
        b10 = jnp.zeros((1, hidden), jnp.float32)
        layers.append((w01, b01, w10, b10))
    key, kw, kb = jax.random.split(key, 3)
    lb = 1.0 / np.sqrt(hidden)
    lin_w = jax.random.uniform(kw, (hidden, 1), jnp.float32, -lb, lb)  # torch Linear weight.T
    lin_b = jax.random.uniform(kb, (1, 1), jnp.float32, -lb, lb)
    return {"layers": layers, "lin_w": lin_w, "lin_b": lin_b}


if __name__ == "__main__":
    N, E = 16, 8            # nodes, hyperedges
    key = jax.random.PRNGKey(0)
    key, kx = jax.random.split(key)

    # node features x_0 : [N, ONE_HOT_0_ENCODING_SIZE]
    x0 = jax.random.normal(kx, (N, ONE_HOT_0_ENCODING_SIZE), jnp.float32)

    # deterministic dense incidence matrix [N, E]; every node is in 2 hyperedges,
    # every hyperedge contains >= 1 node (keeps the HNHN norms finite, like real data)
    rows = np.arange(N)
    B_np = np.zeros((N, E), np.float32)
    B_np[rows, rows % E] = 1.0
    B_np[rows, (rows + 3) % E] = 1.0
    incidence = jnp.asarray(B_np)

    params = init_params(key, ONE_HOT_0_ENCODING_SIZE, HIDDEN, N_LAYERS)

    out = hnhn_forward(x0, incidence, params)
    out = jax.block_until_ready(out)

    ref = hnhn_reference(x0, incidence, params)
    np.testing.assert_allclose(np.asarray(out), np.asarray(ref), rtol=1e-3, atol=1e-3)

    print("KERNEL_OK")
</pallas_src>

<mosaic_0001>
module attributes {stable_mosaic.version = 11 : i64} {
  func.func @kernel(%arg0: memref<16x8xf32, #tpu.memory_space<vmem>>, %arg1: memref<16x8xf32, #tpu.memory_space<vmem>>, %arg2: memref<8x32xf32, #tpu.memory_space<vmem>>, %arg3: memref<1x32xf32, #tpu.memory_space<vmem>>, %arg4: memref<32x32xf32, #tpu.memory_space<vmem>>, %arg5: memref<1x32xf32, #tpu.memory_space<vmem>>, %arg6: memref<32x32xf32, #tpu.memory_space<vmem>>, %arg7: memref<1x32xf32, #tpu.memory_space<vmem>>, %arg8: memref<32x32xf32, #tpu.memory_space<vmem>>, %arg9: memref<1x32xf32, #tpu.memory_space<vmem>>, %arg10: memref<32x1xf32, #tpu.memory_space<vmem>>, %arg11: memref<1x1xf32, #tpu.memory_space<vmem>>, %arg12: memref<1x1xf32, #tpu.memory_space<vmem>>) attributes {dimension_semantics = [], scalar_prefetch = 0 : i64, scratch_operands = 0 : i64, tpu.core_type = #tpu.core_type<tc>} {
    %c0 = arith.constant 0 : index
    %c0_0 = arith.constant 0 : index
    %0 = vector.load %arg1[%c0, %c0_0] : memref<16x8xf32, #tpu.memory_space<vmem>>, vector<16x8xf32>
    %cst = arith.constant dense<0.000000e+00> : vector<8xf32>
    %1 = vector.multi_reduction <add>, %0, %cst [0] : vector<16x8xf32> to vector<8xf32>
    %2 = vector.shape_cast %1 : vector<8xf32> to vector<1x8xf32>
    %cst_1 = arith.constant dense<0.000000e+00> : vector<16xf32>
    %3 = vector.multi_reduction <add>, %0, %cst_1 [1] : vector<16x8xf32> to vector<16xf32>
    %4 = vector.shape_cast %3 : vector<16xf32> to vector<16x1xf32>
    %5 = math.rsqrt %2 : vector<1x8xf32>
    %cst_2 = arith.constant 0.000000e+00 : f32
    %6 = vector.broadcast %cst_2 : f32 to vector<1x8xf32>
    %7 = arith.cmpf ogt, %2, %6 : vector<1x8xf32>
    %8 = arith.mulf %5, %5 : vector<1x8xf32>
    %9 = arith.mulf %8, %5 : vector<1x8xf32>
    %cst_3 = arith.constant 0.000000e+00 : f32
    %10 = vector.broadcast %cst_3 : f32 to vector<1x8xf32>
    %11 = arith.select %7, %9, %10 : vector<1x8xi1>, vector<1x8xf32>
    %cst_4 = arith.constant 0.000000e+00 : f32
    %12 = vector.broadcast %cst_4 : f32 to vector<16x1xf32>
    %13 = arith.cmpf ogt, %4, %12 : vector<16x1xf32>
    %14 = math.rsqrt %4 : vector<16x1xf32>
    %cst_5 = arith.constant 0.000000e+00 : f32
    %15 = vector.broadcast %cst_5 : f32 to vector<16x1xf32>
    %16 = arith.select %13, %14, %15 : vector<16x1xi1>, vector<16x1xf32>
    %cst_6 = arith.constant 0.000000e+00 : f32
    %17 = vector.broadcast %cst_6 : f32 to vector<16x8xf32>
    %18 = arith.cmpf one, %0, %17 : vector<16x8xf32>
    %19 = arith.extui %18 : vector<16x8xi1> to vector<16x8xi32>
    %20 = arith.sitofp %19 : vector<16x8xi32> to vector<16x8xf32>
    %21 = vector.broadcast %11 : vector<1x8xf32> to vector<16x8xf32>
    %22 = arith.mulf %20, %21 : vector<16x8xf32>
    %cst_7 = arith.constant dense<0.000000e+00> : vector<16xf32>
    %23 = vector.multi_reduction <add>, %22, %cst_7 [1] : vector<16x8xf32> to vector<16xf32>
    %24 = vector.shape_cast %23 : vector<16xf32> to vector<16x1xf32>
    %25 = tpu.reciprocal %24 : vector<16x1xf32> -> vector<16x1xf32>
    %26 = vector.broadcast %16 : vector<16x1xf32> to vector<16x8xf32>
    %27 = arith.mulf %20, %26 : vector<16x8xf32>
    %cst_8 = arith.constant dense<0.000000e+00> : vector<8xf32>
    %28 = vector.multi_reduction <add>, %27, %cst_8 [0] : vector<16x8xf32> to vector<8xf32>
    %29 = vector.shape_cast %28 : vector<8xf32> to vector<1x8xf32>
    %30 = tpu.reciprocal %29 : vector<1x8xf32> -> vector<1x8xf32>
    %31 = vector.broadcast %25 : vector<16x1xf32> to vector<16x8xf32>
    %32 = arith.mulf %0, %31 : vector<16x8xf32>
    %33 = vector.broadcast %11 : vector<1x8xf32> to vector<16x8xf32>
    %34 = arith.mulf %32, %33 : vector<16x8xf32>
    %35 = vector.broadcast %30 : vector<1x8xf32> to vector<16x8xf32>
    %36 = arith.mulf %34, %35 : vector<16x8xf32>
    %37 = vector.broadcast %16 : vector<16x1xf32> to vector<16x8xf32>
    %38 = arith.mulf %36, %37 : vector<16x8xf32>
    %cst_9 = arith.constant 0.000000e+00 : f32
    %39 = vector.broadcast %cst_9 : f32 to vector<16x8xf32>
    %40 = arith.cmpf one, %0, %39 : vector<16x8xf32>
    %cst_10 = arith.constant 0.000000e+00 : f32
    %41 = vector.broadcast %cst_10 : f32 to vector<16x8xf32>
    %42 = arith.select %40, %38, %41 : vector<16x8xi1>, vector<16x8xf32>
    %43 = tpu.transpose %42, [1, 0] : vector<16x8xf32> -> vector<8x16xf32>
    %c0_11 = arith.constant 0 : index
    %c0_12 = arith.constant 0 : index
    %44 = vector.load %arg0[%c0_11, %c0_12] : memref<16x8xf32, #tpu.memory_space<vmem>>, vector<16x8xf32>
    %c0_13 = arith.constant 0 : index
    %c0_14 = arith.constant 0 : index
    %45 = vector.load %arg2[%c0_13, %c0_14] : memref<8x32xf32, #tpu.memory_space<vmem>>, vector<8x32xf32>
    %c0_15 = arith.constant 0 : index
    %c0_16 = arith.constant 0 : index
    %46 = vector.load %arg3[%c0_15, %c0_16] : memref<1x32xf32, #tpu.memory_space<vmem>>, vector<1x32xf32>
    %c0_17 = arith.constant 0 : index
    %c0_18 = arith.constant 0 : index
    %47 = vector.load %arg4[%c0_17, %c0_18] : memref<32x32xf32, #tpu.memory_space<vmem>>, vector<32x32xf32>
    %c0_19 = arith.constant 0 : index
    %c0_20 = arith.constant 0 : index
    %48 = vector.load %arg5[%c0_19, %c0_20] : memref<1x32xf32, #tpu.memory_space<vmem>>, vector<1x32xf32>
    %cst_21 = arith.constant dense<0.000000e+00> : vector<16x32xf32>
    %49 = tpu.matmul %44, %45, %cst_21 {dimension_numbers = #tpu.dot_dimension_numbers<[1], [0], [0], [1], [0, 0, 1, 1], [], []>} : vector<16x8xf32>, vector<8x32xf32>, vector<16x32xf32> -> vector<16x32xf32>
    %cst_22 = arith.constant dense<0.000000e+00> : vector<8x32xf32>
    %50 = tpu.matmul %43, %49, %cst_22 {dimension_numbers = #tpu.dot_dimension_numbers<[1], [0], [0], [1], [0, 0, 1, 1], [], []>} : vector<8x16xf32>, vector<16x32xf32>, vector<8x32xf32> -> vector<8x32xf32>
    %51 = vector.broadcast %46 : vector<1x32xf32> to vector<8x32xf32>
    %52 = arith.addf %50, %51 : vector<8x32xf32>
    %cst_23 = arith.constant dense<0.000000e+00> : vector<8x32xf32>
    %53 = tpu.matmul %52, %47, %cst_23 {dimension_numbers = #tpu.dot_dimension_numbers<[1], [0], [0], [1], [0, 0, 1, 1], [], []>} : vector<8x32xf32>, vector<32x32xf32>, vector<8x32xf32> -> vector<8x32xf32>
    %cst_24 = arith.constant dense<0.000000e+00> : vector<16x32xf32>
    %54 = tpu.matmul %42, %53, %cst_24 {dimension_numbers = #tpu.dot_dimension_numbers<[1], [0], [0], [1], [0, 0, 1, 1], [], []>} : vector<16x8xf32>, vector<8x32xf32>, vector<16x32xf32> -> vector<16x32xf32>
    %55 = vector.broadcast %48 : vector<1x32xf32> to vector<16x32xf32>
    %56 = arith.addf %54, %55 : vector<16x32xf32>
    %cst_25 = arith.constant 0.000000e+00 : f32
    %57 = vector.broadcast %cst_25 : f32 to vector<16x32xf32>
    %58 = arith.maximumf %56, %57 : vector<16x32xf32>
    %c0_26 = arith.constant 0 : index
    %c0_27 = arith.constant 0 : index
    %59 = vector.load %arg6[%c0_26, %c0_27] : memref<32x32xf32, #tpu.memory_space<vmem>>, vector<32x32xf32>
    %c0_28 = arith.constant 0 : index
    %c0_29 = arith.constant 0 : index
    %60 = vector.load %arg7[%c0_28, %c0_29] : memref<1x32xf32, #tpu.memory_space<vmem>>, vector<1x32xf32>
    %c0_30 = arith.constant 0 : index
    %c0_31 = arith.constant 0 : index
    %61 = vector.load %arg8[%c0_30, %c0_31] : memref<32x32xf32, #tpu.memory_space<vmem>>, vector<32x32xf32>
    %c0_32 = arith.constant 0 : index
    %c0_33 = arith.constant 0 : index
    %62 = vector.load %arg9[%c0_32, %c0_33] : memref<1x32xf32, #tpu.memory_space<vmem>>, vector<1x32xf32>
    %cst_34 = arith.constant dense<0.000000e+00> : vector<16x32xf32>
    %63 = tpu.matmul %58, %59, %cst_34 {dimension_numbers = #tpu.dot_dimension_numbers<[1], [0], [0], [1], [0, 0, 1, 1], [], []>} : vector<16x32xf32>, vector<32x32xf32>, vector<16x32xf32> -> vector<16x32xf32>
    %cst_35 = arith.constant dense<0.000000e+00> : vector<8x32xf32>
    %64 = tpu.matmul %43, %63, %cst_35 {dimension_numbers = #tpu.dot_dimension_numbers<[1], [0], [0], [1], [0, 0, 1, 1], [], []>} : vector<8x16xf32>, vector<16x32xf32>, vector<8x32xf32> -> vector<8x32xf32>
    %65 = vector.broadcast %60 : vector<1x32xf32> to vector<8x32xf32>
    %66 = arith.addf %64, %65 : vector<8x32xf32>
    %cst_36 = arith.constant dense<0.000000e+00> : vector<8x32xf32>
    %67 = tpu.matmul %66, %61, %cst_36 {dimension_numbers = #tpu.dot_dimension_numbers<[1], [0], [0], [1], [0, 0, 1, 1], [], []>} : vector<8x32xf32>, vector<32x32xf32>, vector<8x32xf32> -> vector<8x32xf32>
    %cst_37 = arith.constant dense<0.000000e+00> : vector<16x32xf32>
    %68 = tpu.matmul %42, %67, %cst_37 {dimension_numbers = #tpu.dot_dimension_numbers<[1], [0], [0], [1], [0, 0, 1, 1], [], []>} : vector<16x8xf32>, vector<8x32xf32>, vector<16x32xf32> -> vector<16x32xf32>
    %69 = vector.broadcast %62 : vector<1x32xf32> to vector<16x32xf32>
    %70 = arith.addf %68, %69 : vector<16x32xf32>
    %cst_38 = arith.constant 0.000000e+00 : f32
    %71 = vector.broadcast %cst_38 : f32 to vector<16x32xf32>
    %72 = arith.maximumf %70, %71 : vector<16x32xf32>
    %cst_39 = arith.constant dense<0xFF800000> : vector<32xf32>
    %73 = vector.multi_reduction <maximumf>, %72, %cst_39 [0] : vector<16x32xf32> to vector<32xf32>
    %74 = vector.shape_cast %73 : vector<32xf32> to vector<1x32xf32>
    %c0_40 = arith.constant 0 : index
    %c0_41 = arith.constant 0 : index
    %75 = vector.load %arg10[%c0_40, %c0_41] : memref<32x1xf32, #tpu.memory_space<vmem>>, vector<32x1xf32>
    %cst_42 = arith.constant dense<0.000000e+00> : vector<1x1xf32>
    %76 = tpu.matmul %74, %75, %cst_42 {dimension_numbers = #tpu.dot_dimension_numbers<[1], [0], [0], [1], [0, 0, 1, 1], [], []>} : vector<1x32xf32>, vector<32x1xf32>, vector<1x1xf32> -> vector<1x1xf32>
    %c0_43 = arith.constant 0 : index
    %c0_44 = arith.constant 0 : index
    %77 = vector.load %arg11[%c0_43, %c0_44] : memref<1x1xf32, #tpu.memory_space<vmem>>, vector<1x1xf32>
    %78 = arith.addf %76, %77 : vector<1x1xf32>
    %c0_45 = arith.constant 0 : index
    %c0_46 = arith.constant 0 : index
    %79 = vector.load %arg12[%c0_45, %c0_46] : memref<1x1xf32, #tpu.memory_space<vmem>>, vector<1x1xf32>
    tpu.vector_store %arg12[%c0_45, %c0_46], %78 {strides = array<i32>} : memref<1x1xf32, #tpu.memory_space<vmem>>, vector<1x1xf32>,
    return
  }
}

</mosaic_0001>

<llo_original>
// kernel: tpu_custom_call.1
$region0: #{tpu_custom_call.1}
  #allocation0 [shape = 'u32[]', space=smem, size = 0x4, offset = 0x4, fixed_abs, tag = 'smem constant byte address 0x4 - core index']
  #allocation1 [shape = 'u32[144,128]{1,0:T(1,128)}', space=vmem, size = 0x12000, scoped, tag = 'internal scratch']
  #allocation2 [shape = 'f32[1,1]{1,0:T(1,128)S(1)}', space=vmem, size = 0x200, scoped, tag = 'scoped memory for tpu_custom_call.1']
  %s0 = inlined_call_operand.vmem [shape: f32[16,8], index: 0, kind: input, shape index: {}]
  %s1 = inlined_call_operand.vmem [shape: f32[16,8], index: 1, kind: input, shape index: {}]
  %s2 = inlined_call_operand.hbm [shape: f32[8,32], index: 2, kind: input, shape index: {}]
  %s3 = inlined_call_operand.hbm [shape: f32[1,32], index: 3, kind: input, shape index: {}]
  %s4 = inlined_call_operand.vmem [shape: f32[32,32], index: 4, kind: input, shape index: {}]
  %s5 = inlined_call_operand.vmem [shape: f32[1,32], index: 5, kind: input, shape index: {}]
  %s6 = inlined_call_operand.vmem [shape: f32[32,32], index: 6, kind: input, shape index: {}]
  %s7 = inlined_call_operand.vmem [shape: f32[1,32], index: 7, kind: input, shape index: {}]
  %s8 = inlined_call_operand.vmem [shape: f32[32,32], index: 8, kind: input, shape index: {}]
  %s9 = inlined_call_operand.vmem [shape: f32[1,32], index: 9, kind: input, shape index: {}]
  %s10 = inlined_call_operand.vmem [shape: f32[32,1], index: 10, kind: input, shape index: {}]
  %s11 = inlined_call_operand.<no memory space> [shape: f32[1,1], index: 11, kind: input, shape index: {}]
  %s12 = inlined_call_operand.hbm [shape: f32[1,1], index: 12, kind: output, shape index: {}]
  %s13 = sld [smem:[#allocation0]]
  $region66: #{tpu_custom_call.1} parent=0
    _
  %s15 = ssub.s32 1, %s13
  %s16 = scalar_select 0, %s15, %s13
  %v17 = vstv %s11
  %18 = vst [vmem:[#allocation2] sm:$0x1] %v17
  $region1: #{tpu_custom_call.1} parent=0
    #allocation3 [shape = 'u8[4096]{0}', space=vmem, size = 0x1000, scoped, tag = 'input window, operand 2, single buffered']
    #allocation4 [shape = 's32[1]{0}', space=sflag, size = 0x4, scoped, tag = 'scoped memory for tpu_custom_call.1']
    #allocation5 [shape = 's32[1]{0}', space=sflag, size = 0x4, scoped, tag = 'scoped memory for tpu_custom_call.1']
    #allocation6 [shape = 'u8[512]{0}', space=vmem, size = 0x400, scoped, tag = 'input window, operand 3, single buffered']
    #allocation7 [shape = 's32[1]{0}', space=sflag, size = 0x4, scoped, tag = 'scoped memory for tpu_custom_call.1']
    #allocation8 [shape = 'u8[512]{0}', space=vmem, size = 0x400, scoped, tag = 'output window, operand 0, single buffered']
    %19 = vsyncpa [#allocation4], 0
    %20 = vsyncpa [#allocation7], 0
    %21 = vsyncpa [#allocation5], 0
    // Predicated region
    $region2: #{tpu_custom_call.1} parent=1 // pred_check
      _
    $region3: #{tpu_custom_call.1} parent=1 // pred_check_branch
      %23 = sbr.rel (0) target = $region5
    $region4: #{tpu_custom_call.1} parent=1 // pred_region
      _
    $region5: #{tpu_custom_call.1} parent=1 // pred_fallthru
      _
    // Predicated region
    $region6: #{tpu_custom_call.1} parent=1 // pred_check
      _
    $region7: #{tpu_custom_call.1} parent=1 // pred_check_branch
      %25 = sbr.rel (0) target = $region9
    $region8: #{tpu_custom_call.1} parent=1 // pred_region
      _
    $region9: #{tpu_custom_call.1} parent=1 // pred_fallthru
      _
    // Predicated region
    $region10: #{tpu_custom_call.1} parent=1 // pred_check
      _
    $region11: #{tpu_custom_call.1} parent=1 // pred_check_branch
      %27 = sbr.rel (0) target = $region13
    $region12: #{tpu_custom_call.1} parent=1 // pred_region
      %s29 = ssub.s32 128, 128
      %30 = vsyncadd [#allocation4], %s29
      %s32 = sshll.u32 [#allocation3], 4
      %s33 = int_to_ptr.vmem [resolvable:$true] %s32
      %35 = dma.hbm_to_vmem [thread:$0]  %s2, 128, %s33, [#allocation4]
    $region13: #{tpu_custom_call.1} parent=1 // pred_fallthru
      _
    // Predicated region
    $region14: #{tpu_custom_call.1} parent=1 // pred_check
      _
    $region15: #{tpu_custom_call.1} parent=1 // pred_check_branch
      %37 = sbr.rel (0) target = $region17
    $region16: #{tpu_custom_call.1} parent=1 // pred_region
      %s39 = ssub.s32 16, 16
      %40 = vsyncadd [#allocation7], %s39
      %s42 = sshll.u32 [#allocation6], 4
      %s43 = int_to_ptr.vmem [resolvable:$true] %s42
      %45 = dma.hbm_to_vmem [thread:$0]  %s3, 16, %s43, [#allocation7]
    $region17: #{tpu_custom_call.1} parent=1 // pred_fallthru
      _
    // Predicated region
    $region18: #{tpu_custom_call.1} parent=1 // pred_check
      _
    $region19: #{tpu_custom_call.1} parent=1 // pred_check_branch
      %47 = sbr.rel (0) target = $region21
    $region20: #{tpu_custom_call.1} parent=1 // pred_region
      _
    $region21: #{tpu_custom_call.1} parent=1 // pred_fallthru
      _
    // Predicated region
    $region22: #{tpu_custom_call.1} parent=1 // pred_check
      _
    $region23: #{tpu_custom_call.1} parent=1 // pred_check_branch
      %49 = sbr.rel (0) target = $region25
    $region24: #{tpu_custom_call.1} parent=1 // pred_region
      _
    $region25: #{tpu_custom_call.1} parent=1 // pred_fallthru
      _
    // Predicated region
    $region26: #{tpu_custom_call.1} parent=1 // pred_check
      _
    $region27: #{tpu_custom_call.1} parent=1 // pred_check_branch
      %51 = sbr.rel (0) target = $region29
    $region28: #{tpu_custom_call.1} parent=1 // pred_region
      _
    $region29: #{tpu_custom_call.1} parent=1 // pred_fallthru
      _
    // Predicated region
    $region30: #{tpu_custom_call.1} parent=1 // pred_check
      _
    $region31: #{tpu_custom_call.1} parent=1 // pred_check_branch
      %53 = sbr.rel (0) target = $region33
    $region32: #{tpu_custom_call.1} parent=1 // pred_region
      _
    $region33: #{tpu_custom_call.1} parent=1 // pred_fallthru
      _
    // Predicated region
    $region34: #{tpu_custom_call.1} parent=1 // pred_check
      _
    $region35: #{tpu_custom_call.1} parent=1 // pred_check_branch
      %55 = sbr.rel (0) target = $region37
    $region36: #{tpu_custom_call.1} parent=1 // pred_region
      _
    $region37: #{tpu_custom_call.1} parent=1 // pred_fallthru
      _
    // Predicated region
    $region38: #{tpu_custom_call.1} parent=1 // pred_check
      _
    $region39: #{tpu_custom_call.1} parent=1 // pred_check_branch
      %57 = sbr.rel (0) target = $region41
    $region40: #{tpu_custom_call.1} parent=1 // pred_region
      _
    $region41: #{tpu_custom_call.1} parent=1 // pred_fallthru
      _
    // Predicated region
    $region42: #{tpu_custom_call.1} parent=1 // pred_check
      _
    $region43: #{tpu_custom_call.1} parent=1 // pred_check_branch
      %59 = sbr.rel (0) target = $region45
    $region44: #{tpu_custom_call.1} parent=1 // pred_region
      _
    $region45: #{tpu_custom_call.1} parent=1 // pred_fallthru
      _
    // Predicated region
    $region46: #{tpu_custom_call.1} parent=1 // pred_check
      _
    $region47: #{tpu_custom_call.1} parent=1 // pred_check_branch
      %61 = sbr.rel (0) target = $region49
    $region48: #{tpu_custom_call.1} parent=1 // pred_region
      _
    $region49: #{tpu_custom_call.1} parent=1 // pred_fallthru
      _
    // Predicated region
    $region50: #{tpu_custom_call.1} parent=1 // pred_check
      _
    $region51: #{tpu_custom_call.1} parent=1 // pred_check_branch
      %63 = sbr.rel (0) target = $region53
    $region52: #{tpu_custom_call.1} parent=1 // pred_region
      %64 = dma.done [#allocation4], 128
    $region53: #{tpu_custom_call.1} parent=1 // pred_fallthru
      _
    // Predicated region
    $region54: #{tpu_custom_call.1} parent=1 // pred_check
      _
    $region55: #{tpu_custom_call.1} parent=1 // pred_check_branch
      %66 = sbr.rel (0) target = $region57
    $region56: #{tpu_custom_call.1} parent=1 // pred_region
      %67 = dma.done [#allocation7], 16
    $region57: #{tpu_custom_call.1} parent=1 // pred_fallthru
      _
    %v68 = vld [vmem:[%s1] sm:$0xff]
    %v69 = vld [vmem:[%s1 + $0x8] sm:$0xff]
    %vm70 = vcmask 64512
    %v71 = vsel %vm70, %v68, 0.0
    %v72 = vsel %vm70, %v69, 0.0
    %v73 = vadd.f32 %v71, %v72
    %v74 = vrot.slane %v73, 4
    %v75 = vadd.f32 %v73, %v74
    %v76 = vrot.slane %v75, 2
    %v77 = vadd.f32 %v75, %v76
    %v78 = vrot.slane %v77, 1
    %v79 = vadd.f32 %v77, %v78
    %80 = vadd.xlane.f32.xlu0 %v71
    %v81 = vpop.xlane.xlu0 %80
    %82 = vadd.xlane.f32.xlu0 %v72
    %v83 = vpop.xlane.xlu0 %82
    %v84 = vrsqrt.pop %v79
    %vm85 = vcmp.gt.f32.partialorder %v79, 0.0
    %v86 = vmul.f32 %v84, %v84
    %v87 = vmul.f32 %v86, %v84
    %v88 = vsel %vm85, %v87, 0.0
    %vm89 = vcmp.gt.f32.partialorder %v81, 0.0
    %vm90 = vcmp.gt.f32.partialorder %v83, 0.0
    %v91 = vrsqrt.pop %v81
    %v92 = vrsqrt.pop %v83
    %v93 = vsel %vm89, %v91, 0.0
    %v94 = vsel %vm90, %v92, 0.0
    %vm95 = vcmp.ne.f32.partialorder %v68, 0.0
    %vm96 = vcmp.ne.f32.partialorder %v69, 0.0
    %v97 = vsel %vm95, 1, 0
    %v98 = vsel %vm96, 1, 0
    %v99 = vcvt.s32.f32 %v97
    %v100 = vcvt.s32.f32 %v98
    %v101 = vmul.f32 %v99, %v88
    %v102 = vmul.f32 %v100, %v88
    %v103 = vsel %vm70, %v101, 0.0
    %104 = vadd.xlane.f32.xlu0 %v103
    %v105 = vpop.xlane.xlu0 %104
    %v106 = vsel %vm70, %v102, 0.0
    %107 = vadd.xlane.f32.xlu0 %v106
    %v108 = vpop.xlane.xlu0 %107
    %v109 = vrcp.pop %v105
    %v110 = vrcp.pop %v108
    %v111 = vmul.f32 %v99, %v93
    %v112 = vmul.f32 %v100, %v94
    %v113 = vsel %vm70, %v111, 0.0
    %v114 = vsel %vm70, %v112, 0.0
    %v115 = vadd.f32 %v113, %v114
    %v116 = vrot.slane %v115, 4
    %v117 = vadd.f32 %v115, %v116
    %v118 = vrot.slane %v117, 2
    %v119 = vadd.f32 %v117, %v118
    %v120 = vrot.slane %v119, 1
    %v121 = vadd.f32 %v119, %v120
    %v122 = vrcp.pop %v121
    %v123 = vmul.f32 %v68, %v109
    %v124 = vmul.f32 %v69, %v110
    %v125 = vmul.f32 %v123, %v88
    %v126 = vmul.f32 %v124, %v88
    %v127 = vmul.f32 %v125, %v122
    %v128 = vmul.f32 %v126, %v122
    %v129 = vmul.f32 %v127, %v93
    %v130 = vmul.f32 %v128, %v94
    %v131 = vsel %vm95, %v129, 0.0
    %v132 = vsel %vm96, %v130, 0.0
    %133 = vxpose.xlu0.b32.start [1/16] %v131, 128
    %134 = vxpose.xlu0.b32.cont [2/16] %v132, 128
    %135 = vxpose.xlu0.b32.cont [3/16] 0.0, 128
    %136 = vxpose.xlu0.b32.cont [4/16] 0.0, 128
    %137 = vxpose.xlu0.b32.cont [5/16] 0.0, 128
    %138 = vxpose.xlu0.b32.cont [6/16] 0.0, 128
    %139 = vxpose.xlu0.b32.cont [7/16] 0.0, 128
    %140 = vxpose.xlu0.b32.cont [8/16] 0.0, 128
    %141 = vxpose.xlu0.b32.cont [9/16] 0.0, 128
    %142 = vxpose.xlu0.b32.cont [10/16] 0.0, 128
    %143 = vxpose.xlu0.b32.cont [11/16] 0.0, 128
    %144 = vxpose.xlu0.b32.cont [12/16] 0.0, 128
    %145 = vxpose.xlu0.b32.cont [13/16] 0.0, 128
    %146 = vxpose.xlu0.b32.cont [14/16] 0.0, 128
    %147 = vxpose.xlu0.b32.cont [15/16] 0.0, 128
    %148 = vxpose.xlu0.b32.end [16/16] 0.0, 128
    %v149 = vpop.trf.xlu0
    %v150 = vpop.trf.xlu0
    %v151 = vpop.trf.xlu0
    %v152 = vpop.trf.xlu0
    %v153 = vpop.trf.xlu0
    %v154 = vpop.trf.xlu0
    %v155 = vpop.trf.xlu0
    %v156 = vpop.trf.xlu0
    %v157 = vpop.trf.xlu0
    %v158 = vpop.trf.xlu0
    %v159 = vpop.trf.xlu0
    %v160 = vpop.trf.xlu0
    %v161 = vpop.trf.xlu0
    %v162 = vpop.trf.xlu0
    %v163 = vpop.trf.xlu0
    %v164 = vpop.trf.xlu0
    %v165 = vld [vmem:[%s0] sm:$0xff]
    %v166 = vld [vmem:[%s0 + $0x8] sm:$0xff]
    %v167 = vld [vmem:[#allocation3] sm:$0xff]
    %v168 = vld [vmem:[#allocation6] sm:$0x1]
    %v169 = vld [vmem:[%s4] sm:$0xff]
    %v170 = vld [vmem:[%s4 + $0x8] sm:$0xff]
    %v171 = vld [vmem:[%s4 + $0x10] sm:$0xff]
    %v172 = vld [vmem:[%s4 + $0x18] sm:$0xff]
    %v173 = vld [vmem:[%s5] sm:$0x1]
    %v175 = vsel %vm70, %v165, 0
    %v178 = vsel %vm70, %v166, 0
    %180 = vmatprep.subr.mxu0 0.0
    %181 = vmatpush1.msra.mxu0 %v167
    %182 = vmatprep.subr.mxu0 0.0
    %183 = vmatpush1.msra.mxu0 0.0
    %184 = vmatprep.subr.mxu0 0.0
    %185 = vmatpush1.msra.mxu0 0.0
    %186 = vmatprep.subr.mxu0 0.0
    %187 = vmatpush1.msra.mxu0 0.0
    %188 = vmatprep.subr.mxu0 0.0
    %189 = vmatpush1.msra.mxu0 0.0
    %190 = vmatprep.subr.mxu0 0.0
    %191 = vmatpush1.msra.mxu0 0.0
    %192 = vmatprep.subr.mxu0 0.0
    %193 = vmatpush1.msra.mxu0 0.0
    %194 = vmatprep.subr.mxu0 0.0
    %195 = vmatpush1.msra.mxu0 0.0
    %196 = vmatprep.subr.mxu0 0.0
    %197 = vmatpush1.msra.mxu0 0.0
    %198 = vmatprep.subr.mxu0 0.0
    %199 = vmatpush1.msra.mxu0 0.0
    %200 = vmatprep.subr.mxu0 0.0
    %201 = vmatpush1.msra.mxu0 0.0
    %202 = vmatprep.subr.mxu0 0.0
    %203 = vmatpush1.msra.mxu0 0.0
    %204 = vmatprep.subr.mxu0 0.0
    %205 = vmatpush1.msra.mxu0 0.0
    %206 = vmatprep.subr.mxu0 0.0
    %207 = vmatpush1.msra.mxu0 0.0
    %208 = vmatprep.subr.mxu0 0.0
    %209 = vmatpush1.msra.mxu0 0.0
    %210 = vmatprep.subr.mxu0 0.0
    %211 = vmatpush1.msra.mxu0 0.0
    %212 = vmatprep.subr.mxu0 0.0
    %213 = vmatpush1.msra.mxu0 0.0
    %214 = vmatprep.subr.mxu0 0.0
    %215 = vmatpush1.msra.mxu0 0.0
    %216 = vmatprep.subr.mxu0 0.0
    %217 = vmatpush1.msra.mxu0 0.0
    %218 = vmatprep.subr.mxu0 0.0
    %219 = vmatpush1.msra.mxu0 0.0
    %220 = vmatprep.subr.mxu0 0.0
    %221 = vmatpush1.msra.mxu0 0.0
    %222 = vmatprep.subr.mxu0 0.0
    %223 = vmatpush1.msra.mxu0 0.0
    %224 = vmatprep.subr.mxu0 0.0
    %225 = vmatpush1.msra.mxu0 0.0
    %226 = vmatprep.subr.mxu0 0.0
    %227 = vmatpush1.msra.mxu0 0.0
    %228 = vmatprep.subr.mxu0 0.0
    %229 = vmatpush1.msra.mxu0 0.0
    %230 = vmatprep.subr.mxu0 0.0
    %231 = vmatpush1.msra.mxu0 0.0
    %232 = vmatprep.subr.mxu0 0.0
    %233 = vmatpush1.msra.mxu0 0.0
    %234 = vmatprep.subr.mxu0 0.0
    %235 = vmatpush1.msra.mxu0 0.0
    %236 = vmatprep.subr.mxu0 0.0
    %237 = vmatpush1.msra.mxu0 0.0
    %238 = vmatprep.subr.mxu0 0.0
    %239 = vmatpush1.msra.mxu0 0.0
    %240 = vmatprep.subr.mxu0 0.0
    %241 = vmatpush1.msra.mxu0 0.0
    %242 = vmatprep.subr.mxu0 0.0
    %243 = vmatpush1.msra.mxu0 0.0
    %244 = vmatprep.mubr.f32.mxu0 0.0
    %245 = vmatmul.mubr.f32.gmra.mrb[0].mxu0 %v175
    %v246 = vpop.f32.mrb[0].mxu0
    %v247 = vadd.f32 0.0, %v246
    %v248 = vpop.f32.mrb[0].mxu0
    %249 = vmatprep.mubr.f32.mxu0 0.0
    %250 = vmatmul.mubr.f32.gmra.mrb[0].mxu0 %v178
    %v251 = vpop.f32.mrb[0].mxu0
    %v252 = vadd.f32 0.0, %v251
    %v253 = vpop.f32.mrb[0].mxu0
    %254 = vdwg.mxu0
    %v256 = vlaneseq
    %v257 = vshrl.u32 %v256, 7
    %v258 = vsub.s32 0, %v257
    %v259 = vrot.slane %v168, %v258
    %vm261 = vcmask 130048
    %v263 = vsel %vm261, %v149, 0
    %265 = vmatprep.subr.mxu0 0.0
    %266 = vmatpush1.msra.mxu0 %v247
    %267 = vmatprep.subr.mxu0 0.0
    %268 = vmatpush1.msra.mxu0 %v252
    %269 = vmatprep.subr.mxu0 0.0
    %270 = vmatpush1.msra.mxu0 0.0
    %271 = vmatprep.subr.mxu0 0.0
    %272 = vmatpush1.msra.mxu0 0.0
    %273 = vmatprep.subr.mxu0 0.0
    %274 = vmatpush1.msra.mxu0 0.0
    %275 = vmatprep.subr.mxu0 0.0
    %276 = vmatpush1.msra.mxu0 0.0
    %277 = vmatprep.subr.mxu0 0.0
    %278 = vmatpush1.msra.mxu0 0.0
    %279 = vmatprep.subr.mxu0 0.0
    %280 = vmatpush1.msra.mxu0 0.0
    %281 = vmatprep.subr.mxu0 0.0
    %282 = vmatpush1.msra.mxu0 0.0
    %283 = vmatprep.subr.mxu0 0.0
    %284 = vmatpush1.msra.mxu0 0.0
    %285 = vmatprep.subr.mxu0 0.0
    %286 = vmatpush1.msra.mxu0 0.0
    %287 = vmatprep.subr.mxu0 0.0
    %288 = vmatpush1.msra.mxu0 0.0
    %289 = vmatprep.subr.mxu0 0.0
    %290 = vmatpush1.msra.mxu0 0.0
    %291 = vmatprep.subr.mxu0 0.0
    %292 = vmatpush1.msra.mxu0 0.0
    %293 = vmatprep.subr.mxu0 0.0
    %294 = vmatpush1.msra.mxu0 0.0
    %295 = vmatprep.subr.mxu0 0.0
    %296 = vmatpush1.msra.mxu0 0.0
    %297 = vmatprep.subr.mxu0 0.0
    %298 = vmatpush1.msra.mxu0 0.0
    %299 = vmatprep.subr.mxu0 0.0
    %300 = vmatpush1.msra.mxu0 0.0
    %301 = vmatprep.subr.mxu0 0.0
    %302 = vmatpush1.msra.mxu0 0.0
    %303 = vmatprep.subr.mxu0 0.0
    %304 = vmatpush1.msra.mxu0 0.0
    %305 = vmatprep.subr.mxu0 0.0
    %306 = vmatpush1.msra.mxu0 0.0
    %307 = vmatprep.subr.mxu0 0.0
    %308 = vmatpush1.msra.mxu0 0.0
    %309 = vmatprep.subr.mxu0 0.0
    %310 = vmatpush1.msra.mxu0 0.0
    %311 = vmatprep.subr.mxu0 0.0
    %312 = vmatpush1.msra.mxu0 0.0
    %313 = vmatprep.subr.mxu0 0.0
    %314 = vmatpush1.msra.mxu0 0.0
    %315 = vmatprep.subr.mxu0 0.0
    %316 = vmatpush1.msra.mxu0 0.0
    %317 = vmatprep.subr.mxu0 0.0
    %318 = vmatpush1.msra.mxu0 0.0
    %319 = vmatprep.subr.mxu0 0.0
    %320 = vmatpush1.msra.mxu0 0.0
    %321 = vmatprep.subr.mxu0 0.0
    %322 = vmatpush1.msra.mxu0 0.0
    %323 = vmatprep.subr.mxu0 0.0
    %324 = vmatpush1.msra.mxu0 0.0
    %325 = vmatprep.subr.mxu0 0.0
    %326 = vmatpush1.msra.mxu0 0.0
    %327 = vmatprep.subr.mxu0 0.0
    %328 = vmatpush1.msra.mxu0 0.0
    %329 = vmatprep.mubr.f32.mxu0 0.0
    %330 = vmatmul.mubr.f32.gmra.mrb[0].mxu0 %v263
    %v331 = vpop.f32.mrb[0].mxu0
    %v332 = vadd.f32 %v259, %v331
    %v333 = vpop.f32.mrb[0].mxu0
    %334 = vdwg.mxu0
    %vm335 = vcmask 261120
    %v337 = vsel %vm335, %v332, 0
    %339 = vmatprep.subr.mxu0 0.0
    %340 = vmatpush1.msra.mxu0 %v169
    %341 = vmatprep.subr.mxu0 0.0
    %342 = vmatpush1.msra.mxu0 %v170
    %343 = vmatprep.subr.mxu0 0.0
    %344 = vmatpush1.msra.mxu0 %v171
    %345 = vmatprep.subr.mxu0 0.0
    %346 = vmatpush1.msra.mxu0 %v172
    %347 = vmatprep.subr.mxu0 0.0
    %348 = vmatpush1.msra.mxu0 0.0
    %349 = vmatprep.subr.mxu0 0.0
    %350 = vmatpush1.msra.mxu0 0.0
    %351 = vmatprep.subr.mxu0 0.0
    %352 = vmatpush1.msra.mxu0 0.0
    %353 = vmatprep.subr.mxu0 0.0
    %354 = vmatpush1.msra.mxu0 0.0
    %355 = vmatprep.subr.mxu0 0.0
    %356 = vmatpush1.msra.mxu0 0.0
    %357 = vmatprep.subr.mxu0 0.0
    %358 = vmatpush1.msra.mxu0 0.0
    %359 = vmatprep.subr.mxu0 0.0
    %360 = vmatpush1.msra.mxu0 0.0
    %361 = vmatprep.subr.mxu0 0.0
    %362 = vmatpush1.msra.mxu0 0.0
    %363 = vmatprep.subr.mxu0 0.0
    %364 = vmatpush1.msra.mxu0 0.0
    %365 = vmatprep.subr.mxu0 0.0
    %366 = vmatpush1.msra.mxu0 0.0
    %367 = vmatprep.subr.mxu0 0.0
    %368 = vmatpush1.msra.mxu0 0.0
    %369 = vmatprep.subr.mxu0 0.0
    %370 = vmatpush1.msra.mxu0 0.0
    %371 = vmatprep.subr.mxu0 0.0
    %372 = vmatpush1.msra.mxu0 0.0
    %373 = vmatprep.subr.mxu0 0.0
    %374 = vmatpush1.msra.mxu0 0.0
    %375 = vmatprep.subr.mxu0 0.0
    %376 = vmatpush1.msra.mxu0 0.0
    %377 = vmatprep.subr.mxu0 0.0
    %378 = vmatpush1.msra.mxu0 0.0
    %379 = vmatprep.subr.mxu0 0.0
    %380 = vmatpush1.msra.mxu0 0.0
    %381 = vmatprep.subr.mxu0 0.0
    %382 = vmatpush1.msra.mxu0 0.0
    %383 = vmatprep.subr.mxu0 0.0
    %384 = vmatpush1.msra.mxu0 0.0
    %385 = vmatprep.subr.mxu0 0.0
    %386 = vmatpush1.msra.mxu0 0.0
    %387 = vmatprep.subr.mxu0 0.0
    %388 = vmatpush1.msra.mxu0 0.0
    %389 = vmatprep.subr.mxu0 0.0
    %390 = vmatpush1.msra.mxu0 0.0
    %391 = vmatprep.subr.mxu0 0.0
    %392 = vmatpush1.msra.mxu0 0.0
    %393 = vmatprep.subr.mxu0 0.0
    %394 = vmatpush1.msra.mxu0 0.0
    %395 = vmatprep.subr.mxu0 0.0
    %396 = vmatpush1.msra.mxu0 0.0
    %397 = vmatprep.subr.mxu0 0.0
    %398 = vmatpush1.msra.mxu0 0.0
    %399 = vmatprep.subr.mxu0 0.0
    %400 = vmatpush1.msra.mxu0 0.0
    %401 = vmatprep.subr.mxu0 0.0
    %402 = vmatpush1.msra.mxu0 0.0
    %403 = vmatprep.mubr.f32.mxu0 0.0
    %404 = vmatmul.mubr.f32.gmra.mrb[0].mxu0 %v337
    %v405 = vpop.f32.mrb[0].mxu0
    %v406 = vadd.f32 0.0, %v405
    %v407 = vpop.f32.mrb[0].mxu0
    %408 = vdwg.mxu0
    %v410 = vlaneseq
    %v411 = vshrl.u32 %v410, 7
    %v412 = vsub.s32 0, %v411
    %v413 = vrot.slane %v173, %v412
    %v416 = vsel %vm70, %v131, 0
    %v419 = vsel %vm70, %v132, 0
    %421 = vmatprep.subr.mxu0 0.0
    %422 = vmatpush1.msra.mxu0 %v406
    %423 = vmatprep.subr.mxu0 0.0
    %424 = vmatpush1.msra.mxu0 0.0
    %425 = vmatprep.subr.mxu0 0.0
    %426 = vmatpush1.msra.mxu0 0.0
    %427 = vmatprep.subr.mxu0 0.0
    %428 = vmatpush1.msra.mxu0 0.0
    %429 = vmatprep.subr.mxu0 0.0
    %430 = vmatpush1.msra.mxu0 0.0
    %431 = vmatprep.subr.mxu0 0.0
    %432 = vmatpush1.msra.mxu0 0.0
    %433 = vmatprep.subr.mxu0 0.0
    %434 = vmatpush1.msra.mxu0 0.0
    %435 = vmatprep.subr.mxu0 0.0
    %436 = vmatpush1.msra.mxu0 0.0
    %437 = vmatprep.subr.mxu0 0.0
    %438 = vmatpush1.msra.mxu0 0.0
    %439 = vmatprep.subr.mxu0 0.0
    %440 = vmatpush1.msra.mxu0 0.0
    %441 = vmatprep.subr.mxu0 0.0
    %442 = vmatpush1.msra.mxu0 0.0
    %443 = vmatprep.subr.mxu0 0.0
    %444 = vmatpush1.msra.mxu0 0.0
    %445 = vmatprep.subr.mxu0 0.0
    %446 = vmatpush1.msra.mxu0 0.0
    %447 = vmatprep.subr.mxu0 0.0
    %448 = vmatpush1.msra.mxu0 0.0
    %449 = vmatprep.subr.mxu0 0.0
    %450 = vmatpush1.msra.mxu0 0.0
    %451 = vmatprep.subr.mxu0 0.0
    %452 = vmatpush1.msra.mxu0 0.0
    %453 = vmatprep.subr.mxu0 0.0
    %454 = vmatpush1.msra.mxu0 0.0
    %455 = vmatprep.subr.mxu0 0.0
    %456 = vmatpush1.msra.mxu0 0.0
    %457 = vmatprep.subr.mxu0 0.0
    %458 = vmatpush1.msra.mxu0 0.0
    %459 = vmatprep.subr.mxu0 0.0
    %460 = vmatpush1.msra.mxu0 0.0
    %461 = vmatprep.subr.mxu0 0.0
    %462 = vmatpush1.msra.mxu0 0.0
    %463 = vmatprep.subr.mxu0 0.0
    %464 = vmatpush1.msra.mxu0 0.0
    %465 = vmatprep.subr.mxu0 0.0
    %466 = vmatpush1.msra.mxu0 0.0
    %467 = vmatprep.subr.mxu0 0.0
    %468 = vmatpush1.msra.mxu0 0.0
    %469 = vmatprep.subr.mxu0 0.0
    %470 = vmatpush1.msra.mxu0 0.0
    %471 = vmatprep.subr.mxu0 0.0
    %472 = vmatpush1.msra.mxu0 0.0
    %473 = vmatprep.subr.mxu0 0.0
    %474 = vmatpush1.msra.mxu0 0.0
    %475 = vmatprep.subr.mxu0 0.0
    %476 = vmatpush1.msra.mxu0 0.0
    %477 = vmatprep.subr.mxu0 0.0
    %478 = vmatpush1.msra.mxu0 0.0
    %479 = vmatprep.subr.mxu0 0.0
    %480 = vmatpush1.msra.mxu0 0.0
    %481 = vmatprep.subr.mxu0 0.0
    %482 = vmatpush1.msra.mxu0 0.0
    %483 = vmatprep.subr.mxu0 0.0
    %484 = vmatpush1.msra.mxu0 0.0
    %485 = vmatprep.mubr.f32.mxu0 0.0
    %486 = vmatmul.mubr.f32.gmra.mrb[0].mxu0 %v416
    %v487 = vpop.f32.mrb[0].mxu0
    %v488 = vadd.f32 %v413, %v487
    %v489 = vpop.f32.mrb[0].mxu0
    %490 = vmatprep.mubr.f32.mxu0 0.0
    %491 = vmatmul.mubr.f32.gmra.mrb[0].mxu0 %v419
    %v492 = vpop.f32.mrb[0].mxu0
    %v493 = vadd.f32 %v413, %v492
    %v494 = vpop.f32.mrb[0].mxu0
    %495 = vdwg.mxu0
    %v496 = vmax.f32 %v488, 0.0
    %v497 = vmax.f32 %v493, 0.0
    %v498 = vld [vmem:[%s6] sm:$0xff]
    %v499 = vld [vmem:[%s6 + $0x8] sm:$0xff]
    %v500 = vld [vmem:[%s6 + $0x10] sm:$0xff]
    %v501 = vld [vmem:[%s6 + $0x18] sm:$0xff]
    %v502 = vld [vmem:[%s7] sm:$0x1]
    %v503 = vld [vmem:[%s8] sm:$0xff]
    %v504 = vld [vmem:[%s8 + $0x8] sm:$0xff]
    %v505 = vld [vmem:[%s8 + $0x10] sm:$0xff]
    %v506 = vld [vmem:[%s8 + $0x18] sm:$0xff]
    %v507 = vld [vmem:[%s9] sm:$0x1]
    %v509 = vsel %vm335, %v496, 0
    %v512 = vsel %vm335, %v497, 0
    %514 = vmatprep.subr.mxu0 0.0
    %515 = vmatpush1.msra.mxu0 %v498
    %516 = vmatprep.subr.mxu0 0.0
    %517 = vmatpush1.msra.mxu0 %v499
    %518 = vmatprep.subr.mxu0 0.0
    %519 = vmatpush1.msra.mxu0 %v500
    %520 = vmatprep.subr.mxu0 0.0
    %521 = vmatpush1.msra.mxu0 %v501
    %522 = vmatprep.subr.mxu0 0.0
    %523 = vmatpush1.msra.mxu0 0.0
    %524 = vmatprep.subr.mxu0 0.0
    %525 = vmatpush1.msra.mxu0 0.0
    %526 = vmatprep.subr.mxu0 0.0
    %527 = vmatpush1.msra.mxu0 0.0
    %528 = vmatprep.subr.mxu0 0.0
    %529 = vmatpush1.msra.mxu0 0.0
    %530 = vmatprep.subr.mxu0 0.0
    %531 = vmatpush1.msra.mxu0 0.0
    %532 = vmatprep.subr.mxu0 0.0
    %533 = vmatpush1.msra.mxu0 0.0
    %534 = vmatprep.subr.mxu0 0.0
    %535 = vmatpush1.msra.mxu0 0.0
    %536 = vmatprep.subr.mxu0 0.0
    %537 = vmatpush1.msra.mxu0 0.0
    %538 = vmatprep.subr.mxu0 0.0
    %539 = vmatpush1.msra.mxu0 0.0
    %540 = vmatprep.subr.mxu0 0.0
    %541 = vmatpush1.msra.mxu0 0.0
    %542 = vmatprep.subr.mxu0 0.0
    %543 = vmatpush1.msra.mxu0 0.0
    %544 = vmatprep.subr.mxu0 0.0
    %545 = vmatpush1.msra.mxu0 0.0
    %546 = vmatprep.subr.mxu0 0.0
    %547 = vmatpush1.msra.mxu0 0.0
    %548 = vmatprep.subr.mxu0 0.0
    %549 = vmatpush1.msra.mxu0 0.0
    %550 = vmatprep.subr.mxu0 0.0
    %551 = vmatpush1.msra.mxu0 0.0
    %552 = vmatprep.subr.mxu0 0.0
    %553 = vmatpush1.msra.mxu0 0.0
    %554 = vmatprep.subr.mxu0 0.0
    %555 = vmatpush1.msra.mxu0 0.0
    %556 = vmatprep.subr.mxu0 0.0
    %557 = vmatpush1.msra.mxu0 0.0
    %558 = vmatprep.subr.mxu0 0.0
    %559 = vmatpush1.msra.mxu0 0.0
    %560 = vmatprep.subr.mxu0 0.0
    %561 = vmatpush1.msra.mxu0 0.0
    %562 = vmatprep.subr.mxu0 0.0
    %563 = vmatpush1.msra.mxu0 0.0
    %564 = vmatprep.subr.mxu0 0.0
    %565 = vmatpush1.msra.mxu0 0.0
    %566 = vmatprep.subr.mxu0 0.0
    %567 = vmatpush1.msra.mxu0 0.0
    %568 = vmatprep.subr.mxu0 0.0
    %569 = vmatpush1.msra.mxu0 0.0
    %570 = vmatprep.subr.mxu0 0.0
    %571 = vmatpush1.msra.mxu0 0.0
    %572 = vmatprep.subr.mxu0 0.0
    %573 = vmatpush1.msra.mxu0 0.0
    %574 = vmatprep.subr.mxu0 0.0
    %575 = vmatpush1.msra.mxu0 0.0
    %576 = vmatprep.subr.mxu0 0.0
    %577 = vmatpush1.msra.mxu0 0.0
    %578 = vmatprep.mubr.f32.mxu0 0.0
    %579 = vmatmul.mubr.f32.gmra.mrb[0].mxu0 %v509
    %v580 = vpop.f32.mrb[0].mxu0
    %v581 = vadd.f32 0.0, %v580
    %v582 = vpop.f32.mrb[0].mxu0
    %583 = vmatprep.mubr.f32.mxu0 0.0
    %584 = vmatmul.mubr.f32.gmra.mrb[0].mxu0 %v512
    %v585 = vpop.f32.mrb[0].mxu0
    %v586 = vadd.f32 0.0, %v585
    %v587 = vpop.f32.mrb[0].mxu0
    %588 = vdwg.mxu0
    %v590 = vlaneseq
    %v591 = vshrl.u32 %v590, 7
    %v592 = vsub.s32 0, %v591
    %v593 = vrot.slane %v502, %v592
    %595 = vmatprep.subr.mxu0 0.0
    %596 = vmatpush1.msra.mxu0 %v581
    %597 = vmatprep.subr.mxu0 0.0
    %598 = vmatpush1.msra.mxu0 %v586
    %599 = vmatprep.subr.mxu0 0.0
    %600 = vmatpush1.msra.mxu0 0.0
    %601 = vmatprep.subr.mxu0 0.0
    %602 = vmatpush1.msra.mxu0 0.0
    %603 = vmatprep.subr.mxu0 0.0
    %604 = vmatpush1.msra.mxu0 0.0
    %605 = vmatprep.subr.mxu0 0.0
    %606 = vmatpush1.msra.mxu0 0.0
    %607 = vmatprep.subr.mxu0 0.0
    %608 = vmatpush1.msra.mxu0 0.0
    %609 = vmatprep.subr.mxu0 0.0
    %610 = vmatpush1.msra.mxu0 0.0
    %611 = vmatprep.subr.mxu0 0.0
    %612 = vmatpush1.msra.mxu0 0.0
    %613 = vmatprep.subr.mxu0 0.0
    %614 = vmatpush1.msra.mxu0 0.0
    %615 = vmatprep.subr.mxu0 0.0
    %616 = vmatpush1.msra.mxu0 0.0
    %617 = vmatprep.subr.mxu0 0.0
    %618 = vmatpush1.msra.mxu0 0.0
    %619 = vmatprep.subr.mxu0 0.0
    %620 = vmatpush1.msra.mxu0 0.0
    %621 = vmatprep.subr.mxu0 0.0
    %622 = vmatpush1.msra.mxu0 0.0
    %623 = vmatprep.subr.mxu0 0.0
    %624 = vmatpush1.msra.mxu0 0.0
    %625 = vmatprep.subr.mxu0 0.0
    %626 = vmatpush1.msra.mxu0 0.0
    %627 = vmatprep.subr.mxu0 0.0
    %628 = vmatpush1.msra.mxu0 0.0
    %629 = vmatprep.subr.mxu0 0.0
    %630 = vmatpush1.msra.mxu0 0.0
    %631 = vmatprep.subr.mxu0 0.0
    %632 = vmatpush1.msra.mxu0 0.0
    %633 = vmatprep.subr.mxu0 0.0
    %634 = vmatpush1.msra.mxu0 0.0
    %635 = vmatprep.subr.mxu0 0.0
    %636 = vmatpush1.msra.mxu0 0.0
    %637 = vmatprep.subr.mxu0 0.0
    %638 = vmatpush1.msra.mxu0 0.0
    %639 = vmatprep.subr.mxu0 0.0
    %640 = vmatpush1.msra.mxu0 0.0
    %641 = vmatprep.subr.mxu0 0.0
    %642 = vmatpush1.msra.mxu0 0.0
    %643 = vmatprep.subr.mxu0 0.0
    %644 = vmatpush1.msra.mxu0 0.0
    %645 = vmatprep.subr.mxu0 0.0
    %646 = vmatpush1.msra.mxu0 0.0
    %647 = vmatprep.subr.mxu0 0.0
    %648 = vmatpush1.msra.mxu0 0.0
    %649 = vmatprep.subr.mxu0 0.0
    %650 = vmatpush1.msra.mxu0 0.0
    %651 = vmatprep.subr.mxu0 0.0
    %652 = vmatpush1.msra.mxu0 0.0
    %653 = vmatprep.subr.mxu0 0.0
    %654 = vmatpush1.msra.mxu0 0.0
    %655 = vmatprep.subr.mxu0 0.0
    %656 = vmatpush1.msra.mxu0 0.0
    %657 = vmatprep.subr.mxu0 0.0
    %658 = vmatpush1.msra.mxu0 0.0
    %659 = vmatprep.mubr.f32.mxu0 0.0
    %660 = vmatmul.mubr.f32.gmra.mrb[0].mxu0 %v263
    %v661 = vpop.f32.mrb[0].mxu0
    %v662 = vadd.f32 %v593, %v661
    %v663 = vpop.f32.mrb[0].mxu0
    %664 = vdwg.mxu0
    %v666 = vsel %vm335, %v662, 0
    %668 = vmatprep.subr.mxu0 0.0
    %669 = vmatpush1.msra.mxu0 %v503
    %670 = vmatprep.subr.mxu0 0.0
    %671 = vmatpush1.msra.mxu0 %v504
    %672 = vmatprep.subr.mxu0 0.0
    %673 = vmatpush1.msra.mxu0 %v505
    %674 = vmatprep.subr.mxu0 0.0
    %675 = vmatpush1.msra.mxu0 %v506
    %676 = vmatprep.subr.mxu0 0.0
    %677 = vmatpush1.msra.mxu0 0.0
    %678 = vmatprep.subr.mxu0 0.0
    %679 = vmatpush1.msra.mxu0 0.0
    %680 = vmatprep.subr.mxu0 0.0
    %681 = vmatpush1.msra.mxu0 0.0
    %682 = vmatprep.subr.mxu0 0.0
    %683 = vmatpush1.msra.mxu0 0.0
    %684 = vmatprep.subr.mxu0 0.0
    %685 = vmatpush1.msra.mxu0 0.0
    %686 = vmatprep.subr.mxu0 0.0
    %687 = vmatpush1.msra.mxu0 0.0
    %688 = vmatprep.subr.mxu0 0.0
    %689 = vmatpush1.msra.mxu0 0.0
    %690 = vmatprep.subr.mxu0 0.0
    %691 = vmatpush1.msra.mxu0 0.0
    %692 = vmatprep.subr.mxu0 0.0
    %693 = vmatpush1.msra.mxu0 0.0
    %694 = vmatprep.subr.mxu0 0.0
    %695 = vmatpush1.msra.mxu0 0.0
    %696 = vmatprep.subr.mxu0 0.0
    %697 = vmatpush1.msra.mxu0 0.0
    %698 = vmatprep.subr.mxu0 0.0
    %699 = vmatpush1.msra.mxu0 0.0
    %700 = vmatprep.subr.mxu0 0.0
    %701 = vmatpush1.msra.mxu0 0.0
    %702 = vmatprep.subr.mxu0 0.0
    %703 = vmatpush1.msra.mxu0 0.0
    %704 = vmatprep.subr.mxu0 0.0
    %705 = vmatpush1.msra.mxu0 0.0
    %706 = vmatprep.subr.mxu0 0.0
    %707 = vmatpush1.msra.mxu0 0.0
    %708 = vmatprep.subr.mxu0 0.0
    %709 = vmatpush1.msra.mxu0 0.0
    %710 = vmatprep.subr.mxu0 0.0
    %711 = vmatpush1.msra.mxu0 0.0
    %712 = vmatprep.subr.mxu0 0.0
    %713 = vmatpush1.msra.mxu0 0.0
    %714 = vmatprep.subr.mxu0 0.0
    %715 = vmatpush1.msra.mxu0 0.0
    %716 = vmatprep.subr.mxu0 0.0
    %717 = vmatpush1.msra.mxu0 0.0
    %718 = vmatprep.subr.mxu0 0.0
    %719 = vmatpush1.msra.mxu0 0.0
    %720 = vmatprep.subr.mxu0 0.0
    %721 = vmatpush1.msra.mxu0 0.0
    %722 = vmatprep.subr.mxu0 0.0
    %723 = vmatpush1.msra.mxu0 0.0
    %724 = vmatprep.subr.mxu0 0.0
    %725 = vmatpush1.msra.mxu0 0.0
    %726 = vmatprep.subr.mxu0 0.0
    %727 = vmatpush1.msra.mxu0 0.0
    %728 = vmatprep.subr.mxu0 0.0
    %729 = vmatpush1.msra.mxu0 0.0
    %730 = vmatprep.subr.mxu0 0.0
    %731 = vmatpush1.msra.mxu0 0.0
    %732 = vmatprep.mubr.f32.mxu0 0.0
    %733 = vmatmul.mubr.f32.gmra.mrb[0].mxu0 %v666
    %v734 = vpop.f32.mrb[0].mxu0
    %v735 = vadd.f32 0.0, %v734
    %v736 = vpop.f32.mrb[0].mxu0
    %737 = vdwg.mxu0
    %v739 = vlaneseq
    %v740 = vshrl.u32 %v739, 7
    %v741 = vsub.s32 0, %v740
    %v742 = vrot.slane %v507, %v741
    %744 = vmatprep.subr.mxu0 0.0
    %745 = vmatpush1.msra.mxu0 %v735
    %746 = vmatprep.subr.mxu0 0.0
    %747 = vmatpush1.msra.mxu0 0.0
    %748 = vmatprep.subr.mxu0 0.0
    %749 = vmatpush1.msra.mxu0 0.0
    %750 = vmatprep.subr.mxu0 0.0
    %751 = vmatpush1.msra.mxu0 0.0
    %752 = vmatprep.subr.mxu0 0.0
    %753 = vmatpush1.msra.mxu0 0.0
    %754 = vmatprep.subr.mxu0 0.0
    %755 = vmatpush1.msra.mxu0 0.0
    %756 = vmatprep.subr.mxu0 0.0
    %757 = vmatpush1.msra.mxu0 0.0
    %758 = vmatprep.subr.mxu0 0.0
    %759 = vmatpush1.msra.mxu0 0.0
    %760 = vmatprep.subr.mxu0 0.0
    %761 = vmatpush1.msra.mxu0 0.0
    %762 = vmatprep.subr.mxu0 0.0
    %763 = vmatpush1.msra.mxu0 0.0
    %764 = vmatprep.subr.mxu0 0.0
    %765 = vmatpush1.msra.mxu0 0.0
    %766 = vmatprep.subr.mxu0 0.0
    %767 = vmatpush1.msra.mxu0 0.0
    %768 = vmatprep.subr.mxu0 0.0
    %769 = vmatpush1.msra.mxu0 0.0
    %770 = vmatprep.subr.mxu0 0.0
    %771 = vmatpush1.msra.mxu0 0.0
    %772 = vmatprep.subr.mxu0 0.0
    %773 = vmatpush1.msra.mxu0 0.0
    %774 = vmatprep.subr.mxu0 0.0
    %775 = vmatpush1.msra.mxu0 0.0
    %776 = vmatprep.subr.mxu0 0.0
    %777 = vmatpush1.msra.mxu0 0.0
    %778 = vmatprep.subr.mxu0 0.0
    %779 = vmatpush1.msra.mxu0 0.0
    %780 = vmatprep.subr.mxu0 0.0
    %781 = vmatpush1.msra.mxu0 0.0
    %782 = vmatprep.subr.mxu0 0.0
    %783 = vmatpush1.msra.mxu0 0.0
    %784 = vmatprep.subr.mxu0 0.0
    %785 = vmatpush1.msra.mxu0 0.0
    %786 = vmatprep.subr.mxu0 0.0
    %787 = vmatpush1.msra.mxu0 0.0
    %788 = vmatprep.subr.mxu0 0.0
    %789 = vmatpush1.msra.mxu0 0.0
    %790 = vmatprep.subr.mxu0 0.0
    %791 = vmatpush1.msra.mxu0 0.0
    %792 = vmatprep.subr.mxu0 0.0
    %793 = vmatpush1.msra.mxu0 0.0
    %794 = vmatprep.subr.mxu0 0.0
    %795 = vmatpush1.msra.mxu0 0.0
    %796 = vmatprep.subr.mxu0 0.0
    %797 = vmatpush1.msra.mxu0 0.0
    %798 = vmatprep.subr.mxu0 0.0
    %799 = vmatpush1.msra.mxu0 0.0
    %800 = vmatprep.subr.mxu0 0.0
    %801 = vmatpush1.msra.mxu0 0.0
    %802 = vmatprep.subr.mxu0 0.0
    %803 = vmatpush1.msra.mxu0 0.0
    %804 = vmatprep.subr.mxu0 0.0
    %805 = vmatpush1.msra.mxu0 0.0
    %806 = vmatprep.subr.mxu0 0.0
    %807 = vmatpush1.msra.mxu0 0.0
    %808 = vmatprep.mubr.f32.mxu0 0.0
    %809 = vmatmul.mubr.f32.gmra.mrb[0].mxu0 %v416
    %v810 = vpop.f32.mrb[0].mxu0
    %v811 = vadd.f32 %v742, %v810
    %v812 = vpop.f32.mrb[0].mxu0
    %813 = vmatprep.mubr.f32.mxu0 0.0
    %814 = vmatmul.mubr.f32.gmra.mrb[0].mxu0 %v419
    %v815 = vpop.f32.mrb[0].mxu0
    %v816 = vadd.f32 %v742, %v815
    %v817 = vpop.f32.mrb[0].mxu0
    %818 = vdwg.mxu0
    %v819 = vmax.f32 %v811, 0.0
    %v820 = vmax.f32 %v816, 0.0
    %v821 = vsel %vm335, %v819, -inf
    %v822 = vsel %vm335, %v820, -inf
    %v823 = vmax.f32 %v821, %v822
    %v824 = vrot.slane %v823, 4
    %v825 = vmax.f32 %v823, %v824
    %v826 = vrot.slane %v825, 2
    %v827 = vmax.f32 %v825, %v826
    %v828 = vrot.slane %v827, 1
    %v829 = vmax.f32 %v827, %v828
    %v830 = vld [vmem:[%s10] sm:$0xff]
    %v831 = vld [vmem:[%s10 + $0x8] sm:$0xff]
    %v832 = vld [vmem:[%s10 + $0x10] sm:$0xff]
    %v833 = vld [vmem:[%s10 + $0x18] sm:$0xff]
    %v834 = vld [vmem:[#allocation2] sm:$0x1]
    %v836 = vsel %vm335, %v829, 0
    %838 = vmatprep.subr.mxu0 0.0
    %839 = vmatpush1.msra.mxu0 %v830
    %840 = vmatprep.subr.mxu0 0.0
    %841 = vmatpush1.msra.mxu0 %v831
    %842 = vmatprep.subr.mxu0 0.0
    %843 = vmatpush1.msra.mxu0 %v832
    %844 = vmatprep.subr.mxu0 0.0
    %845 = vmatpush1.msra.mxu0 %v833
    %846 = vmatprep.subr.mxu0 0.0
    %847 = vmatpush1.msra.mxu0 0.0
    %848 = vmatprep.subr.mxu0 0.0
    %849 = vmatpush1.msra.mxu0 0.0
    %850 = vmatprep.subr.mxu0 0.0
    %851 = vmatpush1.msra.mxu0 0.0
    %852 = vmatprep.subr.mxu0 0.0
    %853 = vmatpush1.msra.mxu0 0.0
    %854 = vmatprep.subr.mxu0 0.0
    %855 = vmatpush1.msra.mxu0 0.0
    %856 = vmatprep.subr.mxu0 0.0
    %857 = vmatpush1.msra.mxu0 0.0
    %858 = vmatprep.subr.mxu0 0.0
    %859 = vmatpush1.msra.mxu0 0.0
    %860 = vmatprep.subr.mxu0 0.0
    %861 = vmatpush1.msra.mxu0 0.0
    %862 = vmatprep.subr.mxu0 0.0
    %863 = vmatpush1.msra.mxu0 0.0
    %864 = vmatprep.subr.mxu0 0.0
    %865 = vmatpush1.msra.mxu0 0.0
    %866 = vmatprep.subr.mxu0 0.0
    %867 = vmatpush1.msra.mxu0 0.0
    %868 = vmatprep.subr.mxu0 0.0
    %869 = vmatpush1.msra.mxu0 0.0
    %870 = vmatprep.subr.mxu0 0.0
    %871 = vmatpush1.msra.mxu0 0.0
    %872 = vmatprep.subr.mxu0 0.0
    %873 = vmatpush1.msra.mxu0 0.0
    %874 = vmatprep.subr.mxu0 0.0
    %875 = vmatpush1.msra.mxu0 0.0
    %876 = vmatprep.subr.mxu0 0.0
    %877 = vmatpush1.msra.mxu0 0.0
    %878 = vmatprep.subr.mxu0 0.0
    %879 = vmatpush1.msra.mxu0 0.0
    %880 = vmatprep.subr.mxu0 0.0
    %881 = vmatpush1.msra.mxu0 0.0
    %882 = vmatprep.subr.mxu0 0.0
    %883 = vmatpush1.msra.mxu0 0.0
    %884 = vmatprep.subr.mxu0 0.0
    %885 = vmatpush1.msra.mxu0 0.0
    %886 = vmatprep.subr.mxu0 0.0
    %887 = vmatpush1.msra.mxu0 0.0
    %888 = vmatprep.subr.mxu0 0.0
    %889 = vmatpush1.msra.mxu0 0.0
    %890 = vmatprep.subr.mxu0 0.0
    %891 = vmatpush1.msra.mxu0 0.0
    %892 = vmatprep.subr.mxu0 0.0
    %893 = vmatpush1.msra.mxu0 0.0
    %894 = vmatprep.subr.mxu0 0.0
    %895 = vmatpush1.msra.mxu0 0.0
    %896 = vmatprep.subr.mxu0 0.0
    %897 = vmatpush1.msra.mxu0 0.0
    %898 = vmatprep.subr.mxu0 0.0
    %899 = vmatpush1.msra.mxu0 0.0
    %900 = vmatprep.subr.mxu0 0.0
    %901 = vmatpush1.msra.mxu0 0.0
    %902 = vmatprep.mubr.f32.mxu0 0.0
    %903 = vmatmul.mubr.f32.gmra.mrb[0].mxu0 %v836
    %v904 = vpop.f32.mrb[0].mxu0
    %v905 = vadd.f32 %v834, %v904
    %v906 = vpop.f32.mrb[0].mxu0
    %907 = vdwg.mxu0
    %vm908 = vcmask 0
    %909 = vst.msk [vmem:[#allocation8] sm:$0x1] %vm908, %v905
    // Predicated region
    $region58: #{tpu_custom_call.1} parent=1 // pred_check
      _
    $region59: #{tpu_custom_call.1} parent=1 // pred_check_branch
      %911 = sbr.rel (0) target = $region61
    $region60: #{tpu_custom_call.1} parent=1 // pred_region
      %s913 = ssub.s32 16, 16
      %914 = vsyncadd [#allocation5], %s913
      %s916 = sshll.u32 [#allocation8], 4
      %s917 = int_to_ptr.vmem [resolvable:$true] %s916
      %919 = dma.vmem_to_hbm [thread:$0]  %s917, 16, %s12, [#allocation5]
    $region61: #{tpu_custom_call.1} parent=1 // pred_fallthru
      _
    // Predicated region
    $region62: #{tpu_custom_call.1} parent=1 // pred_check
      _
    $region63: #{tpu_custom_call.1} parent=1 // pred_check_branch
      %921 = sbr.rel (0) target = $region65
    $region64: #{tpu_custom_call.1} parent=1 // pred_region
      %922 = dma.done [#allocation5], 16
    $region65: #{tpu_custom_call.1} parent=1 // pred_fallthru
      _
    %923 = vsyncpa [#allocation4], 1
    %924 = vsyncpa [#allocation7], 1
    %925 = vsyncpa [#allocation5], 1

</llo_original>
